<compile_context>
chip_gen: v6e
topology: v6e:2x2x1
jax: 0.10.0
libtpu: 0.0.40
codegen_flags: <defaults>
</compile_context>

<pallas_src>
import jax
import jax.numpy as jnp
from jax import lax
from jax.experimental import pallas as pl
from jax.experimental.pallas import tpu as pltpu


def cross_attention_kernel(
    fp_ref,      # (B, C, N)   f_part   (Conv1d NCL layout, no wrapper transpose)
    fg_ref,      # (B, C, N)   f_global
    wth_ref,     # (Ci, C)     theta 1x1-conv weight (out, in)
    bth_ref,     # (Ci, 1)     theta bias
    wgphi_ref,   # (2*Ci, C)   g and phi conv weights stacked along the out axis
    bgphi_ref,   # (2*Ci, 1)   g and phi biases stacked
    wz_ref,      # (C, Ci)     W_z conv weight with eval-mode BN scale folded in
    bz_ref,      # (C, 1)      W_z bias with BN scale/shift folded in
    out_ref,     # (B, C, N)
):
    B = fp_ref.shape[0]
    Ci = wth_ref.shape[0]

    wth = wth_ref[...]
    wgphi = wgphi_ref[...]
    wz = wz_ref[...]
    bth = bth_ref[...]
    bgphi = bgphi_ref[...]
    bz = bz_ref[...]

    # Whole batch in one invocation; B is tiny so the loop is a static unroll.
    # Everything stays channel-major (C, N), so no activation transposes are
    # materialized except one trivial (Ci, Ci) tile transpose for the scores.
    for b in range(B):
        fp = fp_ref[b]   # (C, N)
        fg = fg_ref[b]   # (C, N)

        # 1x1 Conv1d projections: (out, in) @ (in, N) -> (out, N) on the MXU.
        theta = jnp.dot(wth, fp, preferred_element_type=jnp.float32) + bth      # (Ci, N)
        gphi = jnp.dot(wgphi, fg, preferred_element_type=jnp.float32) + bgphi   # (2Ci, N)
        g_x = gphi[:Ci]      # (Ci, N)  sublane-aligned split (Ci % 8 == 0)
        phi_x = gphi[Ci:]    # (Ci, N)

        # f[n, m] = sum_k theta[k, n] * phi[k, m]   (torch: theta_x @ phi_x)
        f = jnp.dot(theta.T, phi_x, preferred_element_type=jnp.float32)         # (N, N)

        # Numerically stable softmax over keys; approx reciprocal -> EUP slot.
        m = jnp.max(f, axis=-1, keepdims=True)
        e = jnp.exp(f - m)
        p = e * pl.reciprocal(jnp.sum(e, axis=-1, keepdims=True), approx=True)  # (N, N)

        # y[n, k] = sum_m p[n, m] * g_x[k, m]       (torch: f_div_C @ g_x)
        y = lax.dot_general(p, g_x, (((1,), (1,)), ((), ())),
                            preferred_element_type=jnp.float32)                 # (N, Ci)

        # W_z (+ folded BatchNorm): wy[c, n] = sum_k wz[c, k] * y[n, k]
        wy = lax.dot_general(wz, y, (((1,), (1,)), ((), ())),
                             preferred_element_type=jnp.float32) + bz           # (C, N)

        # Residual connection, written straight back in NCL layout.
        out_ref[b] = (wy + fp).astype(out_ref.dtype)


def cross_attention(f_part, f_global, params):
    """f_part, f_global: (B, C, N) float32 (PyTorch Conv1d NCL layout)."""
    B, C, N = f_part.shape
    Ci = C // 2
    assert f_global.shape == (B, C, N)

    fp = f_part.astype(jnp.float32)
    fg = f_global.astype(jnp.float32)

    # Conv1d weights (out, in, 1) -> (out, in); g and phi fused into one matrix.
    wth = params["theta_w"][:, :, 0]                                            # (Ci, C)
    bth = params["theta_b"][:, None]                                            # (Ci, 1)
    wgphi = jnp.concatenate([params["g_w"][:, :, 0],
                             params["phi_w"][:, :, 0]], axis=0)                 # (2Ci, C)
    bgphi = jnp.concatenate([params["g_b"], params["phi_b"]], axis=0)[:, None]  # (2Ci, 1)

    # Fold eval-mode BatchNorm1d (scale/shift) into the W_z conv weight/bias.
    eps = 1e-5  # PyTorch BatchNorm1d default
    bn_scale = params["bn_gamma"] / jnp.sqrt(params["bn_var"] + eps)            # (C,)
    bn_shift = params["bn_beta"] - params["bn_mean"] * bn_scale                 # (C,)
    wz = params["wz_w"][:, :, 0] * bn_scale[:, None]                            # (C, Ci)
    bz = (params["wz_b"] * bn_scale + bn_shift)[:, None]                        # (C, 1)

    # Everything (a few KB total) lives in VMEM; single invocation, no grid.
    vmem = pl.BlockSpec(memory_space=pltpu.MemorySpace.VMEM)
    return pl.pallas_call(
        cross_attention_kernel,
        out_shape=jax.ShapeDtypeStruct((B, C, N), jnp.float32),
        in_specs=[vmem] * 8,
        out_specs=vmem,
    )(fp, fg, wth, bth, wgphi, bgphi, wz, bz)


def reference(f_part, f_global, p):
    """Pure-JAX replica of the PyTorch forward (eval-mode BN), NCL layout."""
    def conv1(x, w, b):  # x (B,C,N), w (O,C,1), b (O,)
        return jnp.einsum("bcn,oc->bon", x, w[:, :, 0]) + b[None, :, None]

    g_x = jnp.transpose(conv1(f_global, p["g_w"], p["g_b"]), (0, 2, 1))            # (B,N,Ci)
    theta_x = jnp.transpose(conv1(f_part, p["theta_w"], p["theta_b"]), (0, 2, 1))  # (B,N,Ci)
    phi_x = conv1(f_global, p["phi_w"], p["phi_b"])                                # (B,Ci,N)
    f = jnp.einsum("bnc,bcm->bnm", theta_x, phi_x)
    f = jax.nn.softmax(f, axis=-1)
    y = jnp.einsum("bnm,bmc->bnc", f, g_x)          # (B,N,Ci)
    y = jnp.transpose(y, (0, 2, 1))                 # (B,Ci,N)
    wy = conv1(y, p["wz_w"], p["wz_b"])             # (B,C,N)
    eps = 1e-5
    scale = p["bn_gamma"] / jnp.sqrt(p["bn_var"] + eps)
    shift = p["bn_beta"] - p["bn_mean"] * scale
    wy = wy * scale[None, :, None] + shift[None, :, None]
    return wy + f_part


if __name__ == "__main__":
    B, C, N = 2, 32, 16       # in_dim = 32 -> inter_channels = 16; shared seq length 16
    Ci = C // 2

    key = jax.random.PRNGKey(0)
    ks = jax.random.split(key, 12)
    f_part = jax.random.normal(ks[0], (B, C, N), jnp.float32)
    f_global = jax.random.normal(ks[1], (B, C, N), jnp.float32)

    # NOTE: the original __init__ zero-inits the BatchNorm weight/bias, which makes
    # W_y identically 0 (z == f_part).  Nonzero deterministic values are used here
    # so the full attention path is exercised; shapes match the module exactly.
    params = dict(
        g_w=0.1 * jax.random.normal(ks[2], (Ci, C, 1), jnp.float32),
        g_b=0.1 * jax.random.normal(ks[3], (Ci,), jnp.float32),
        theta_w=0.1 * jax.random.normal(ks[4], (Ci, C, 1), jnp.float32),
        theta_b=0.1 * jax.random.normal(ks[5], (Ci,), jnp.float32),
        phi_w=0.1 * jax.random.normal(ks[6], (Ci, C, 1), jnp.float32),
        phi_b=0.1 * jax.random.normal(ks[7], (Ci,), jnp.float32),
        wz_w=0.1 * jax.random.normal(ks[8], (C, Ci, 1), jnp.float32),
        wz_b=0.1 * jax.random.normal(ks[9], (C,), jnp.float32),
        bn_gamma=0.1 * jax.random.normal(ks[10], (C,), jnp.float32),
        bn_beta=0.1 * jax.random.normal(ks[11], (C,), jnp.float32),
        bn_mean=jnp.zeros((C,), jnp.float32),   # running stats at init
        bn_var=jnp.ones((C,), jnp.float32),
    )

    out = cross_attention(f_part, f_global, params)
    jax.block_until_ready(out)

    ref = reference(f_part, f_global, params)
    assert out.shape == (B, C, N)
    assert jnp.allclose(out, ref, rtol=1e-3, atol=1e-3), "kernel mismatch vs JAX reference"
    print("KERNEL_OK")
</pallas_src>

<mosaic_0001>
module attributes {stable_mosaic.version = 11 : i64} {
  func.func @cross_attention_kernel(%arg0: memref<2x32x16xf32, #tpu.memory_space<vmem>>, %arg1: memref<2x32x16xf32, #tpu.memory_space<vmem>>, %arg2: memref<16x32xf32, #tpu.memory_space<vmem>>, %arg3: memref<16x1xf32, #tpu.memory_space<vmem>>, %arg4: memref<32x32xf32, #tpu.memory_space<vmem>>, %arg5: memref<32x1xf32, #tpu.memory_space<vmem>>, %arg6: memref<32x16xf32, #tpu.memory_space<vmem>>, %arg7: memref<32x1xf32, #tpu.memory_space<vmem>>, %arg8: memref<2x32x16xf32, #tpu.memory_space<vmem>>) attributes {dimension_semantics = [], scalar_prefetch = 0 : i64, scratch_operands = 0 : i64, tpu.core_type = #tpu.core_type<tc>} {
    %c0 = arith.constant 0 : index
    %c0_0 = arith.constant 0 : index
    %0 = vector.load %arg2[%c0, %c0_0] : memref<16x32xf32, #tpu.memory_space<vmem>>, vector<16x32xf32>
    %c0_1 = arith.constant 0 : index
    %c0_2 = arith.constant 0 : index
    %1 = vector.load %arg4[%c0_1, %c0_2] : memref<32x32xf32, #tpu.memory_space<vmem>>, vector<32x32xf32>
    %c0_3 = arith.constant 0 : index
    %c0_4 = arith.constant 0 : index
    %2 = vector.load %arg6[%c0_3, %c0_4] : memref<32x16xf32, #tpu.memory_space<vmem>>, vector<32x16xf32>
    %c0_5 = arith.constant 0 : index
    %c0_6 = arith.constant 0 : index
    %3 = vector.load %arg3[%c0_5, %c0_6] : memref<16x1xf32, #tpu.memory_space<vmem>>, vector<16x1xf32>
    %c0_7 = arith.constant 0 : index
    %c0_8 = arith.constant 0 : index
    %4 = vector.load %arg5[%c0_7, %c0_8] : memref<32x1xf32, #tpu.memory_space<vmem>>, vector<32x1xf32>
    %c0_9 = arith.constant 0 : index
    %c0_10 = arith.constant 0 : index
    %5 = vector.load %arg7[%c0_9, %c0_10] : memref<32x1xf32, #tpu.memory_space<vmem>>, vector<32x1xf32>
    %c0_11 = arith.constant 0 : index
    %c0_12 = arith.constant 0 : index
    %c0_13 = arith.constant 0 : index
    %6 = vector.load %arg0[%c0_11, %c0_12, %c0_13] : memref<2x32x16xf32, #tpu.memory_space<vmem>>, vector<1x32x16xf32>
    %7 = vector.shape_cast %6 : vector<1x32x16xf32> to vector<32x16xf32>
    %c0_14 = arith.constant 0 : index
    %c0_15 = arith.constant 0 : index
    %c0_16 = arith.constant 0 : index
    %8 = vector.load %arg1[%c0_14, %c0_15, %c0_16] : memref<2x32x16xf32, #tpu.memory_space<vmem>>, vector<1x32x16xf32>
    %9 = vector.shape_cast %8 : vector<1x32x16xf32> to vector<32x16xf32>
    %cst = arith.constant dense<0.000000e+00> : vector<16x16xf32>
    %10 = tpu.matmul %0, %7, %cst {dimension_numbers = #tpu.dot_dimension_numbers<[1], [0], [0], [1], [0, 0, 1, 1], [], []>} : vector<16x32xf32>, vector<32x16xf32>, vector<16x16xf32> -> vector<16x16xf32>
    %11 = vector.broadcast %3 : vector<16x1xf32> to vector<16x16xf32>
    %12 = arith.addf %10, %11 : vector<16x16xf32>
    %cst_17 = arith.constant dense<0.000000e+00> : vector<32x16xf32>
    %13 = tpu.matmul %1, %9, %cst_17 {dimension_numbers = #tpu.dot_dimension_numbers<[1], [0], [0], [1], [0, 0, 1, 1], [], []>} : vector<32x32xf32>, vector<32x16xf32>, vector<32x16xf32> -> vector<32x16xf32>
    %14 = vector.broadcast %4 : vector<32x1xf32> to vector<32x16xf32>
    %15 = arith.addf %13, %14 : vector<32x16xf32>
    %16 = vector.extract_strided_slice %15 {offsets = [0, 0], sizes = [16, 16], strides = [1, 1]} : vector<32x16xf32> to vector<16x16xf32>
    %17 = vector.extract_strided_slice %15 {offsets = [16, 0], sizes = [16, 16], strides = [1, 1]} : vector<32x16xf32> to vector<16x16xf32>
    %18 = tpu.transpose %12, [1, 0] : vector<16x16xf32> -> vector<16x16xf32>
    %cst_18 = arith.constant dense<0.000000e+00> : vector<16x16xf32>
    %19 = tpu.matmul %18, %17, %cst_18 {dimension_numbers = #tpu.dot_dimension_numbers<[1], [0], [0], [1], [0, 0, 1, 1], [], []>} : vector<16x16xf32>, vector<16x16xf32>, vector<16x16xf32> -> vector<16x16xf32>
    %cst_19 = arith.constant dense<0xFF800000> : vector<16xf32>
    %20 = vector.multi_reduction <maximumf>, %19, %cst_19 [1] : vector<16x16xf32> to vector<16xf32>
    %21 = vector.shape_cast %20 : vector<16xf32> to vector<16x1xf32>
    %22 = vector.broadcast %21 : vector<16x1xf32> to vector<16x16xf32>
    %23 = arith.subf %19, %22 : vector<16x16xf32>
    %24 = math.exp %23 : vector<16x16xf32>
    %cst_20 = arith.constant dense<0.000000e+00> : vector<16xf32>
    %25 = vector.multi_reduction <add>, %24, %cst_20 [1] : vector<16x16xf32> to vector<16xf32>
    %26 = vector.shape_cast %25 : vector<16xf32> to vector<16x1xf32>
    %27 = tpu.reciprocal %26 {approx = true} : vector<16x1xf32> -> vector<16x1xf32>
    %28 = vector.broadcast %27 : vector<16x1xf32> to vector<16x16xf32>
    %29 = arith.mulf %24, %28 : vector<16x16xf32>
    %cst_21 = arith.constant dense<0.000000e+00> : vector<16x16xf32>
    %30 = tpu.matmul %29, %16, %cst_21 {dimension_numbers = #tpu.dot_dimension_numbers<[1], [1], [0], [0], [0, 0, 1, 0], [], []>} : vector<16x16xf32>, vector<16x16xf32>, vector<16x16xf32> -> vector<16x16xf32>
    %cst_22 = arith.constant dense<0.000000e+00> : vector<32x16xf32>
    %31 = tpu.matmul %2, %30, %cst_22 {dimension_numbers = #tpu.dot_dimension_numbers<[1], [1], [0], [0], [0, 0, 1, 0], [], []>} : vector<32x16xf32>, vector<16x16xf32>, vector<32x16xf32> -> vector<32x16xf32>
    %32 = vector.broadcast %5 : vector<32x1xf32> to vector<32x16xf32>
    %33 = arith.addf %31, %32 : vector<32x16xf32>
    %34 = arith.addf %33, %7 : vector<32x16xf32>
    %c0_23 = arith.constant 0 : index
    %c0_24 = arith.constant 0 : index
    %c0_25 = arith.constant 0 : index
    %35 = vector.load %arg8[%c0_23, %c0_24, %c0_25] : memref<2x32x16xf32, #tpu.memory_space<vmem>>, vector<1x32x16xf32>
    %36 = vector.shape_cast %35 : vector<1x32x16xf32> to vector<32x16xf32>
    %37 = vector.shape_cast %34 : vector<32x16xf32> to vector<1x32x16xf32>
    tpu.vector_store %arg8[%c0_23, %c0_24, %c0_25], %37 {strides = array<i32>} : memref<2x32x16xf32, #tpu.memory_space<vmem>>, vector<1x32x16xf32>,
    %c1 = arith.constant 1 : index
    %c0_26 = arith.constant 0 : index
    %c0_27 = arith.constant 0 : index
    %38 = vector.load %arg0[%c1, %c0_26, %c0_27] : memref<2x32x16xf32, #tpu.memory_space<vmem>>, vector<1x32x16xf32>
    %39 = vector.shape_cast %38 : vector<1x32x16xf32> to vector<32x16xf32>
    %c1_28 = arith.constant 1 : index
    %c0_29 = arith.constant 0 : index
    %c0_30 = arith.constant 0 : index
    %40 = vector.load %arg1[%c1_28, %c0_29, %c0_30] : memref<2x32x16xf32, #tpu.memory_space<vmem>>, vector<1x32x16xf32>
    %41 = vector.shape_cast %40 : vector<1x32x16xf32> to vector<32x16xf32>
    %cst_31 = arith.constant dense<0.000000e+00> : vector<16x16xf32>
    %42 = tpu.matmul %0, %39, %cst_31 {dimension_numbers = #tpu.dot_dimension_numbers<[1], [0], [0], [1], [0, 0, 1, 1], [], []>} : vector<16x32xf32>, vector<32x16xf32>, vector<16x16xf32> -> vector<16x16xf32>
    %43 = vector.broadcast %3 : vector<16x1xf32> to vector<16x16xf32>
    %44 = arith.addf %42, %43 : vector<16x16xf32>
    %cst_32 = arith.constant dense<0.000000e+00> : vector<32x16xf32>
    %45 = tpu.matmul %1, %41, %cst_32 {dimension_numbers = #tpu.dot_dimension_numbers<[1], [0], [0], [1], [0, 0, 1, 1], [], []>} : vector<32x32xf32>, vector<32x16xf32>, vector<32x16xf32> -> vector<32x16xf32>
    %46 = vector.broadcast %4 : vector<32x1xf32> to vector<32x16xf32>
    %47 = arith.addf %45, %46 : vector<32x16xf32>
    %48 = vector.extract_strided_slice %47 {offsets = [0, 0], sizes = [16, 16], strides = [1, 1]} : vector<32x16xf32> to vector<16x16xf32>
    %49 = vector.extract_strided_slice %47 {offsets = [16, 0], sizes = [16, 16], strides = [1, 1]} : vector<32x16xf32> to vector<16x16xf32>
    %50 = tpu.transpose %44, [1, 0] : vector<16x16xf32> -> vector<16x16xf32>
    %cst_33 = arith.constant dense<0.000000e+00> : vector<16x16xf32>
    %51 = tpu.matmul %50, %49, %cst_33 {dimension_numbers = #tpu.dot_dimension_numbers<[1], [0], [0], [1], [0, 0, 1, 1], [], []>} : vector<16x16xf32>, vector<16x16xf32>, vector<16x16xf32> -> vector<16x16xf32>
    %cst_34 = arith.constant dense<0xFF800000> : vector<16xf32>
    %52 = vector.multi_reduction <maximumf>, %51, %cst_34 [1] : vector<16x16xf32> to vector<16xf32>
    %53 = vector.shape_cast %52 : vector<16xf32> to vector<16x1xf32>
    %54 = vector.broadcast %53 : vector<16x1xf32> to vector<16x16xf32>
    %55 = arith.subf %51, %54 : vector<16x16xf32>
    %56 = math.exp %55 : vector<16x16xf32>
    %cst_35 = arith.constant dense<0.000000e+00> : vector<16xf32>
    %57 = vector.multi_reduction <add>, %56, %cst_35 [1] : vector<16x16xf32> to vector<16xf32>
    %58 = vector.shape_cast %57 : vector<16xf32> to vector<16x1xf32>
    %59 = tpu.reciprocal %58 {approx = true} : vector<16x1xf32> -> vector<16x1xf32>
    %60 = vector.broadcast %59 : vector<16x1xf32> to vector<16x16xf32>
    %61 = arith.mulf %56, %60 : vector<16x16xf32>
    %cst_36 = arith.constant dense<0.000000e+00> : vector<16x16xf32>
    %62 = tpu.matmul %61, %48, %cst_36 {dimension_numbers = #tpu.dot_dimension_numbers<[1], [1], [0], [0], [0, 0, 1, 0], [], []>} : vector<16x16xf32>, vector<16x16xf32>, vector<16x16xf32> -> vector<16x16xf32>
    %cst_37 = arith.constant dense<0.000000e+00> : vector<32x16xf32>
    %63 = tpu.matmul %2, %62, %cst_37 {dimension_numbers = #tpu.dot_dimension_numbers<[1], [1], [0], [0], [0, 0, 1, 0], [], []>} : vector<32x16xf32>, vector<16x16xf32>, vector<32x16xf32> -> vector<32x16xf32>
    %64 = vector.broadcast %5 : vector<32x1xf32> to vector<32x16xf32>
    %65 = arith.addf %63, %64 : vector<32x16xf32>
    %66 = arith.addf %65, %39 : vector<32x16xf32>
    %c1_38 = arith.constant 1 : index
    %c0_39 = arith.constant 0 : index
    %c0_40 = arith.constant 0 : index
    %67 = vector.load %arg8[%c1_38, %c0_39, %c0_40] : memref<2x32x16xf32, #tpu.memory_space<vmem>>, vector<1x32x16xf32>
    %68 = vector.shape_cast %67 : vector<1x32x16xf32> to vector<32x16xf32>
    %69 = vector.shape_cast %66 : vector<32x16xf32> to vector<1x32x16xf32>
    tpu.vector_store %arg8[%c1_38, %c0_39, %c0_40], %69 {strides = array<i32>} : memref<2x32x16xf32, #tpu.memory_space<vmem>>, vector<1x32x16xf32>,
    return
  }
}

</mosaic_0001>

<llo_original>
// kernel: tpu_custom_call.1
$region0: #{tpu_custom_call.1}
  #allocation0 [shape = 'u32[]', space=smem, size = 0x4, offset = 0x4, fixed_abs, tag = 'smem constant byte address 0x4 - core index']
  #allocation1 [shape = 'u32[144,128]{1,0:T(1,128)}', space=vmem, size = 0x12000, scoped, tag = 'internal scratch']
  %s0 = inlined_call_operand.vmem [shape: f32[2,32,16], index: 0, kind: input, shape index: {}]
  %s1 = inlined_call_operand.vmem [shape: f32[2,32,16], index: 1, kind: input, shape index: {}]
  %s2 = inlined_call_operand.vmem [shape: f32[16,32], index: 2, kind: input, shape index: {}]
  %s3 = inlined_call_operand.vmem [shape: f32[16,1], index: 3, kind: input, shape index: {}]
  %s4 = inlined_call_operand.vmem [shape: f32[32,32], index: 4, kind: input, shape index: {}]
  %s5 = inlined_call_operand.vmem [shape: f32[32,1], index: 5, kind: input, shape index: {}]
  %s6 = inlined_call_operand.vmem [shape: f32[32,16], index: 6, kind: input, shape index: {}]
  %s7 = inlined_call_operand.vmem [shape: f32[32,1], index: 7, kind: input, shape index: {}]
  %s8 = inlined_call_operand.vmem [shape: f32[2,32,16], index: 8, kind: output, shape index: {}]
  %s9 = sld [smem:[#allocation0]]
  $region42: #{tpu_custom_call.1} parent=0
    _
  %s11 = ssub.s32 1, %s9
  %s12 = scalar_select 0, %s11, %s9
  // Predicated region
  $region2: #{tpu_custom_call.1} parent=0 // pred_check
    _
  $region3: #{tpu_custom_call.1} parent=0 // pred_check_branch
    %14 = sbr.rel (0) target = $region5
  $region4: #{tpu_custom_call.1} parent=0 // pred_region
    _
  $region5: #{tpu_custom_call.1} parent=0 // pred_fallthru
    _
  // Predicated region
  $region6: #{tpu_custom_call.1} parent=0 // pred_check
    _
  $region7: #{tpu_custom_call.1} parent=0 // pred_check_branch
    %16 = sbr.rel (0) target = $region9
  $region8: #{tpu_custom_call.1} parent=0 // pred_region
    _
  $region9: #{tpu_custom_call.1} parent=0 // pred_fallthru
    _
  // Predicated region
  $region10: #{tpu_custom_call.1} parent=0 // pred_check
    _
  $region11: #{tpu_custom_call.1} parent=0 // pred_check_branch
    %18 = sbr.rel (0) target = $region13
  $region12: #{tpu_custom_call.1} parent=0 // pred_region
    _
  $region13: #{tpu_custom_call.1} parent=0 // pred_fallthru
    _
  // Predicated region
  $region14: #{tpu_custom_call.1} parent=0 // pred_check
    _
  $region15: #{tpu_custom_call.1} parent=0 // pred_check_branch
    %20 = sbr.rel (0) target = $region17
  $region16: #{tpu_custom_call.1} parent=0 // pred_region
    _
  $region17: #{tpu_custom_call.1} parent=0 // pred_fallthru
    _
  // Predicated region
  $region18: #{tpu_custom_call.1} parent=0 // pred_check
    _
  $region19: #{tpu_custom_call.1} parent=0 // pred_check_branch
    %22 = sbr.rel (0) target = $region21
  $region20: #{tpu_custom_call.1} parent=0 // pred_region
    _
  $region21: #{tpu_custom_call.1} parent=0 // pred_fallthru
    _
  // Predicated region
  $region22: #{tpu_custom_call.1} parent=0 // pred_check
    _
  $region23: #{tpu_custom_call.1} parent=0 // pred_check_branch
    %24 = sbr.rel (0) target = $region25
  $region24: #{tpu_custom_call.1} parent=0 // pred_region
    _
  $region25: #{tpu_custom_call.1} parent=0 // pred_fallthru
    _
  // Predicated region
  $region26: #{tpu_custom_call.1} parent=0 // pred_check
    _
  $region27: #{tpu_custom_call.1} parent=0 // pred_check_branch
    %26 = sbr.rel (0) target = $region29
  $region28: #{tpu_custom_call.1} parent=0 // pred_region
    _
  $region29: #{tpu_custom_call.1} parent=0 // pred_fallthru
    _
  // Predicated region
  $region30: #{tpu_custom_call.1} parent=0 // pred_check
    _
  $region31: #{tpu_custom_call.1} parent=0 // pred_check_branch
    %28 = sbr.rel (0) target = $region33
  $region32: #{tpu_custom_call.1} parent=0 // pred_region
    _
  $region33: #{tpu_custom_call.1} parent=0 // pred_fallthru
    _
  %v29 = vld [vmem:[%s2] sm:$0xff]
  %v30 = vld [vmem:[%s2 + $0x8] sm:$0xff]
  %v31 = vld [vmem:[%s4] sm:$0xff]
  %v32 = vld [vmem:[%s4 + $0x8] sm:$0xff]
  %v33 = vld [vmem:[%s4 + $0x10] sm:$0xff]
  %v34 = vld [vmem:[%s4 + $0x18] sm:$0xff]
  %v35 = vld [vmem:[%s6] sm:$0xff]
  %v36 = vld [vmem:[%s6 + $0x8] sm:$0xff]
  %v37 = vld [vmem:[%s6 + $0x10] sm:$0xff]
  %v38 = vld [vmem:[%s6 + $0x18] sm:$0xff]
  %v39 = vld [vmem:[%s3] sm:$0xff]
  %v40 = vld [vmem:[%s3 + $0x8] sm:$0xff]
  %v41 = vld [vmem:[%s5] sm:$0xff]
  %v42 = vld [vmem:[%s5 + $0x8] sm:$0xff]
  %v43 = vld [vmem:[%s5 + $0x10] sm:$0xff]
  %v44 = vld [vmem:[%s5 + $0x18] sm:$0xff]
  %v45 = vld [vmem:[%s7] sm:$0xff]
  %v46 = vld [vmem:[%s7 + $0x8] sm:$0xff]
  %v47 = vld [vmem:[%s7 + $0x10] sm:$0xff]
  %v48 = vld [vmem:[%s7 + $0x18] sm:$0xff]
  %v49 = vld [vmem:[%s0] sm:$0xff]
  %v50 = vld [vmem:[%s0 + $0x8] sm:$0xff]
  %v51 = vld [vmem:[%s0 + $0x10] sm:$0xff]
  %v52 = vld [vmem:[%s0 + $0x18] sm:$0xff]
  %v53 = vld [vmem:[%s1] sm:$0xff]
  %v54 = vld [vmem:[%s1 + $0x8] sm:$0xff]
  %v55 = vld [vmem:[%s1 + $0x10] sm:$0xff]
  %v56 = vld [vmem:[%s1 + $0x18] sm:$0xff]
  %58 = vset.pattern.permute.xlu0 0
  %59 = vperm.xlu0 %58, %v39
  %v60 = vpop.permute.xlu0 %59
  %63 = vset.pattern.permute.xlu0 0
  %64 = vperm.xlu0 %63, %v40
  %v65 = vpop.permute.xlu0 %64
  %vm67 = vcmask 261120
  %v69 = vsel %vm67, %v29, 0
  %v72 = vsel %vm67, %v30, 0
  %74 = vmatprep.subr.mxu0 0.0
  %75 = vmatpush1.msra.mxu0 0.0
  %76 = vmatprep.subr.mxu0 0.0
  %77 = vmatpush1.msra.mxu0 0.0
  %78 = vmatprep.subr.mxu0 0.0
  %79 = vmatpush1.msra.mxu0 0.0
  %80 = vmatprep.subr.mxu0 0.0
  %81 = vmatpush1.msra.mxu0 0.0
  %82 = vmatprep.subr.mxu0 0.0
  %83 = vmatpush1.msra.mxu0 0.0
  %84 = vmatprep.subr.mxu0 0.0
  %85 = vmatpush1.msra.mxu0 0.0
  %86 = vmatprep.subr.mxu0 0.0
  %87 = vmatpush1.msra.mxu0 0.0
  %88 = vmatprep.subr.mxu0 0.0
  %89 = vmatpush1.msra.mxu0 0.0
  %90 = vmatprep.subr.mxu0 0.0
  %91 = vmatpush1.msra.mxu0 0.0
  %92 = vmatprep.subr.mxu0 0.0
  %93 = vmatpush1.msra.mxu0 0.0
  %94 = vmatprep.subr.mxu0 0.0
  %95 = vmatpush1.msra.mxu0 0.0
  %96 = vmatprep.subr.mxu0 0.0
  %97 = vmatpush1.msra.mxu0 0.0
  %98 = vmatprep.subr.mxu0 0.0
  %99 = vmatpush1.msra.mxu0 %v52
  %100 = vmatprep.subr.mxu0 0.0
  %101 = vmatpush1.msra.mxu0 %v51
  %102 = vmatprep.subr.mxu0 0.0
  %103 = vmatpush1.msra.mxu0 %v50
  %104 = vmatprep.subr.mxu0 0.0
  %105 = vmatpush1.msra.mxu0 %v49
  %106 = vmatprep.subr.mxu0 0.0
  %107 = vmatpush2.msra.mxu0 0.0
  %108 = vmatprep.subr.mxu0 0.0
  %109 = vmatpush2.msra.mxu0 0.0
  %110 = vmatprep.subr.mxu0 0.0
  %111 = vmatpush2.msra.mxu0 0.0
  %112 = vmatprep.subr.mxu0 0.0
  %113 = vmatpush2.msra.mxu0 0.0
  %114 = vmatprep.subr.mxu0 0.0
  %115 = vmatpush2.msra.mxu0 0.0
  %116 = vmatprep.subr.mxu0 0.0
  %117 = vmatpush2.msra.mxu0 0.0
  %118 = vmatprep.subr.mxu0 0.0
  %119 = vmatpush2.msra.mxu0 0.0
  %120 = vmatprep.subr.mxu0 0.0
  %121 = vmatpush2.msra.mxu0 0.0
  %122 = vmatprep.subr.mxu0 0.0
  %123 = vmatpush2.msra.mxu0 0.0
  %124 = vmatprep.subr.mxu0 0.0
  %125 = vmatpush2.msra.mxu0 0.0
  %126 = vmatprep.subr.mxu0 0.0
  %127 = vmatpush2.msra.mxu0 0.0
  %128 = vmatprep.subr.mxu0 0.0
  %129 = vmatpush2.msra.mxu0 0.0
  %130 = vmatprep.subr.mxu0 0.0
  %131 = vmatpush2.msra.mxu0 0.0
  %132 = vmatprep.subr.mxu0 0.0
  %133 = vmatpush2.msra.mxu0 0.0
  %134 = vmatprep.subr.mxu0 0.0
  %135 = vmatpush2.msra.mxu0 0.0
  %136 = vmatprep.subr.mxu0 0.0
  %137 = vmatpush2.msra.mxu0 0.0
  %138 = vmatprep.mubr.f32.mxu0 0.0
  %139 = vmatmul.mubr.f32.gmra.mxu0 %v69
  %v140 = vpop.f32.mrf.mxu0
  %v141 = vadd.f32 %v60, %v140
  %v142 = vpop.f32.mrf.mxu0
  %143 = vmatprep.mubr.f32.mxu0 0.0
  %144 = vmatmul.mubr.f32.gmra.mxu0 %v72
  %v145 = vpop.f32.mrf.mxu0
  %v146 = vadd.f32 %v65, %v145
  %v147 = vpop.f32.mrf.mxu0
  %148 = vdwg.mxu0
  %150 = vset.pattern.permute.xlu0 0
  %151 = vperm.xlu0 %150, %v41
  %v152 = vpop.permute.xlu0 %151
  %155 = vset.pattern.permute.xlu0 0
  %156 = vperm.xlu0 %155, %v42
  %v157 = vpop.permute.xlu0 %156
  %160 = vset.pattern.permute.xlu0 0
  %161 = vperm.xlu0 %160, %v43
  %v162 = vpop.permute.xlu0 %161
  %165 = vset.pattern.permute.xlu0 0
  %166 = vperm.xlu0 %165, %v44
  %v167 = vpop.permute.xlu0 %166
  %v170 = vsel %vm67, %v31, 0
  %v173 = vsel %vm67, %v32, 0
  %v176 = vsel %vm67, %v33, 0
  %v179 = vsel %vm67, %v34, 0
  %181 = vmatprep.subr.mxu0 0.0
  %182 = vmatpush1.msra.mxu0 0.0
  %183 = vmatprep.subr.mxu0 0.0
  %184 = vmatpush1.msra.mxu0 0.0
  %185 = vmatprep.subr.mxu0 0.0
  %186 = vmatpush1.msra.mxu0 0.0
  %187 = vmatprep.subr.mxu0 0.0
  %188 = vmatpush1.msra.mxu0 0.0
  %189 = vmatprep.subr.mxu0 0.0
  %190 = vmatpush1.msra.mxu0 0.0
  %191 = vmatprep.subr.mxu0 0.0
  %192 = vmatpush1.msra.mxu0 0.0
  %193 = vmatprep.subr.mxu0 0.0
  %194 = vmatpush1.msra.mxu0 0.0
  %195 = vmatprep.subr.mxu0 0.0
  %196 = vmatpush1.msra.mxu0 0.0
  %197 = vmatprep.subr.mxu0 0.0
  %198 = vmatpush1.msra.mxu0 0.0
  %199 = vmatprep.subr.mxu0 0.0
  %200 = vmatpush1.msra.mxu0 0.0
  %201 = vmatprep.subr.mxu0 0.0
  %202 = vmatpush1.msra.mxu0 0.0
  %203 = vmatprep.subr.mxu0 0.0
  %204 = vmatpush1.msra.mxu0 0.0
  %205 = vmatprep.subr.mxu0 0.0
  %206 = vmatpush1.msra.mxu0 %v56
  %207 = vmatprep.subr.mxu0 0.0
  %208 = vmatpush1.msra.mxu0 %v55
  %209 = vmatprep.subr.mxu0 0.0
  %210 = vmatpush1.msra.mxu0 %v54
  %211 = vmatprep.subr.mxu0 0.0
  %212 = vmatpush1.msra.mxu0 %v53
  %213 = vmatprep.subr.mxu0 0.0
  %214 = vmatpush2.msra.mxu0 0.0
  %215 = vmatprep.subr.mxu0 0.0
  %216 = vmatpush2.msra.mxu0 0.0
  %217 = vmatprep.subr.mxu0 0.0
  %218 = vmatpush2.msra.mxu0 0.0
  %219 = vmatprep.subr.mxu0 0.0
  %220 = vmatpush2.msra.mxu0 0.0
  %221 = vmatprep.subr.mxu0 0.0
  %222 = vmatpush2.msra.mxu0 0.0
  %223 = vmatprep.subr.mxu0 0.0
  %224 = vmatpush2.msra.mxu0 0.0
  %225 = vmatprep.subr.mxu0 0.0
  %226 = vmatpush2.msra.mxu0 0.0
  %227 = vmatprep.subr.mxu0 0.0
  %228 = vmatpush2.msra.mxu0 0.0
  %229 = vmatprep.subr.mxu0 0.0
  %230 = vmatpush2.msra.mxu0 0.0
  %231 = vmatprep.subr.mxu0 0.0
  %232 = vmatpush2.msra.mxu0 0.0
  %233 = vmatprep.subr.mxu0 0.0
  %234 = vmatpush2.msra.mxu0 0.0
  %235 = vmatprep.subr.mxu0 0.0
  %236 = vmatpush2.msra.mxu0 0.0
  %237 = vmatprep.subr.mxu0 0.0
  %238 = vmatpush2.msra.mxu0 0.0
  %239 = vmatprep.subr.mxu0 0.0
  %240 = vmatpush2.msra.mxu0 0.0
  %241 = vmatprep.subr.mxu0 0.0
  %242 = vmatpush2.msra.mxu0 0.0
  %243 = vmatprep.subr.mxu0 0.0
  %244 = vmatpush2.msra.mxu0 0.0
  %245 = vmatprep.mubr.f32.mxu0 0.0
  %246 = vmatmul.mubr.f32.gmra.mxu0 %v170
  %v247 = vpop.f32.mrf.mxu0
  %v248 = vadd.f32 %v152, %v247
  %v249 = vpop.f32.mrf.mxu0
  %250 = vmatprep.mubr.f32.mxu0 0.0
  %251 = vmatmul.mubr.f32.gmra.mxu0 %v173
  %v252 = vpop.f32.mrf.mxu0
  %v253 = vadd.f32 %v157, %v252
  %v254 = vpop.f32.mrf.mxu0
  %255 = vmatprep.mubr.f32.mxu0 0.0
  %256 = vmatmul.mubr.f32.gmra.mxu0 %v176
  %v257 = vpop.f32.mrf.mxu0
  %v258 = vadd.f32 %v162, %v257
  %v259 = vpop.f32.mrf.mxu0
  %260 = vmatprep.mubr.f32.mxu0 0.0
  %261 = vmatmul.mubr.f32.gmra.mxu0 %v179
  %v262 = vpop.f32.mrf.mxu0
  %v263 = vadd.f32 %v167, %v262
  %v264 = vpop.f32.mrf.mxu0
  %265 = vdwg.mxu0
  %266 = vxpose.xlu0.b32.start [1/16] %v141, 128
  %267 = vxpose.xlu0.b32.cont [2/16] %v146, 128
  %268 = vxpose.xlu0.b32.cont [3/16] 0.0, 128
  %269 = vxpose.xlu0.b32.cont [4/16] 0.0, 128
  %270 = vxpose.xlu0.b32.cont [5/16] 0.0, 128
  %271 = vxpose.xlu0.b32.cont [6/16] 0.0, 128
  %272 = vxpose.xlu0.b32.cont [7/16] 0.0, 128
  %273 = vxpose.xlu0.b32.cont [8/16] 0.0, 128
  %274 = vxpose.xlu0.b32.cont [9/16] 0.0, 128
  %275 = vxpose.xlu0.b32.cont [10/16] 0.0, 128
  %276 = vxpose.xlu0.b32.cont [11/16] 0.0, 128
  %277 = vxpose.xlu0.b32.cont [12/16] 0.0, 128
  %278 = vxpose.xlu0.b32.cont [13/16] 0.0, 128
  %279 = vxpose.xlu0.b32.cont [14/16] 0.0, 128
  %280 = vxpose.xlu0.b32.cont [15/16] 0.0, 128
  %281 = vxpose.xlu0.b32.end [16/16] 0.0, 128
  %v282 = vpop.trf.xlu0
  %v283 = vpop.trf.xlu0
  %v284 = vpop.trf.xlu0
  %v285 = vpop.trf.xlu0
  %v286 = vpop.trf.xlu0
  %v287 = vpop.trf.xlu0
  %v288 = vpop.trf.xlu0
  %v289 = vpop.trf.xlu0
  %v290 = vpop.trf.xlu0
  %v291 = vpop.trf.xlu0
  %v292 = vpop.trf.xlu0
  %v293 = vpop.trf.xlu0
  %v294 = vpop.trf.xlu0
  %v295 = vpop.trf.xlu0
  %v296 = vpop.trf.xlu0
  %v297 = vpop.trf.xlu0
  %vm298 = vcmask 130048
  %v300 = vsel %vm298, %v282, 0
  %v303 = vsel %vm298, %v283, 0
  %305 = vmatprep.subr.mxu0 0.0
  %306 = vmatpush1.msra.mxu0 0.0
  %307 = vmatprep.subr.mxu0 0.0
  %308 = vmatpush1.msra.mxu0 0.0
  %309 = vmatprep.subr.mxu0 0.0
  %310 = vmatpush1.msra.mxu0 0.0
  %311 = vmatprep.subr.mxu0 0.0
  %312 = vmatpush1.msra.mxu0 0.0
  %313 = vmatprep.subr.mxu0 0.0
  %314 = vmatpush1.msra.mxu0 0.0
  %315 = vmatprep.subr.mxu0 0.0
  %316 = vmatpush1.msra.mxu0 0.0
  %317 = vmatprep.subr.mxu0 0.0
  %318 = vmatpush1.msra.mxu0 0.0
  %319 = vmatprep.subr.mxu0 0.0
  %320 = vmatpush1.msra.mxu0 0.0
  %321 = vmatprep.subr.mxu0 0.0
  %322 = vmatpush1.msra.mxu0 0.0
  %323 = vmatprep.subr.mxu0 0.0
  %324 = vmatpush1.msra.mxu0 0.0
  %325 = vmatprep.subr.mxu0 0.0
  %326 = vmatpush1.msra.mxu0 0.0
  %327 = vmatprep.subr.mxu0 0.0
  %328 = vmatpush1.msra.mxu0 0.0
  %329 = vmatprep.subr.mxu0 0.0
  %330 = vmatpush1.msra.mxu0 0.0
  %331 = vmatprep.subr.mxu0 0.0
  %332 = vmatpush1.msra.mxu0 0.0
  %333 = vmatprep.subr.mxu0 0.0
  %334 = vmatpush1.msra.mxu0 %v263
  %335 = vmatprep.subr.mxu0 0.0
  %336 = vmatpush1.msra.mxu0 %v258
  %337 = vmatprep.subr.mxu0 0.0
  %338 = vmatpush2.msra.mxu0 0.0
  %339 = vmatprep.subr.mxu0 0.0
  %340 = vmatpush2.msra.mxu0 0.0
  %341 = vmatprep.subr.mxu0 0.0
  %342 = vmatpush2.msra.mxu0 0.0
  %343 = vmatprep.subr.mxu0 0.0
  %344 = vmatpush2.msra.mxu0 0.0
  %345 = vmatprep.subr.mxu0 0.0
  %346 = vmatpush2.msra.mxu0 0.0
  %347 = vmatprep.subr.mxu0 0.0
  %348 = vmatpush2.msra.mxu0 0.0
  %349 = vmatprep.subr.mxu0 0.0
  %350 = vmatpush2.msra.mxu0 0.0
  %351 = vmatprep.subr.mxu0 0.0
  %352 = vmatpush2.msra.mxu0 0.0
  %353 = vmatprep.subr.mxu0 0.0
  %354 = vmatpush2.msra.mxu0 0.0
  %355 = vmatprep.subr.mxu0 0.0
  %356 = vmatpush2.msra.mxu0 0.0
  %357 = vmatprep.subr.mxu0 0.0
  %358 = vmatpush2.msra.mxu0 0.0
  %359 = vmatprep.subr.mxu0 0.0
  %360 = vmatpush2.msra.mxu0 0.0
  %361 = vmatprep.subr.mxu0 0.0
  %362 = vmatpush2.msra.mxu0 0.0
  %363 = vmatprep.subr.mxu0 0.0
  %364 = vmatpush2.msra.mxu0 0.0
  %365 = vmatprep.subr.mxu0 0.0
  %366 = vmatpush2.msra.mxu0 0.0
  %367 = vmatprep.subr.mxu0 0.0
  %368 = vmatpush2.msra.mxu0 0.0
  %369 = vmatprep.mubr.f32.mxu0 0.0
  %370 = vmatmul.mubr.f32.gmra.mxu0 %v300
  %v371 = vpop.f32.mrf.mxu0
  %v372 = vadd.f32 0.0, %v371
  %v373 = vpop.f32.mrf.mxu0
  %374 = vmatprep.mubr.f32.mxu0 0.0
  %375 = vmatmul.mubr.f32.gmra.mxu0 %v303
  %v376 = vpop.f32.mrf.mxu0
  %v377 = vadd.f32 0.0, %v376
  %v378 = vpop.f32.mrf.mxu0
  %379 = vdwg.mxu0
  %v380 = vsel %vm298, %v372, -inf
  %381 = vmax.xlane.f32.xlu0 %v380
  %v382 = vpop.xlane.xlu0 %381
  %v383 = vsel %vm298, %v377, -inf
  %384 = vmax.xlane.f32.xlu0 %v383
  %v385 = vpop.xlane.xlu0 %384
  %v386 = vsub.f32 %v372, %v382
  %v387 = vsub.f32 %v377, %v385
  %v388 = vmul.f32 %v386, 1.442695
  %v389 = vpow.pop %v388
  %v390 = vmul.f32 %v387, 1.442695
  %v391 = vpow.pop %v390
  %v392 = vsel %vm298, %v389, 0.0
  %393 = vadd.xlane.f32.xlu0 %v392
  %v394 = vpop.xlane.xlu0 %393
  %v395 = vsel %vm298, %v391, 0.0
  %396 = vadd.xlane.f32.xlu0 %v395
  %v397 = vpop.xlane.xlu0 %396
  %v398 = vrcp.pop %v394
  %v399 = vrcp.pop %v397
  %v400 = vmul.f32 %v389, %v398
  %v401 = vmul.f32 %v391, %v399
  %v403 = vsel %vm298, %v400, 0
  %v406 = vsel %vm298, %v401, 0
  %v409 = vsel %vm298, %v248, 0
  %v412 = vsel %vm298, %v253, 0
  %414 = vmatprep.subr.mxu0 0.0
  %415 = vmatpush1.xpose.msra.mxu0 0.0
  %416 = vmatprep.subr.mxu0 0.0
  %417 = vmatpush1.xpose.msra.mxu0 0.0
  %418 = vmatprep.subr.mxu0 0.0
  %419 = vmatpush1.xpose.msra.mxu0 0.0
  %420 = vmatprep.subr.mxu0 0.0
  %421 = vmatpush1.xpose.msra.mxu0 0.0
  %422 = vmatprep.subr.mxu0 0.0
  %423 = vmatpush1.xpose.msra.mxu0 0.0
  %424 = vmatprep.subr.mxu0 0.0
  %425 = vmatpush1.xpose.msra.mxu0 0.0
  %426 = vmatprep.subr.mxu0 0.0
  %427 = vmatpush1.xpose.msra.mxu0 0.0
  %428 = vmatprep.subr.mxu0 0.0
  %429 = vmatpush1.xpose.msra.mxu0 0.0
  %430 = vmatprep.subr.mxu0 0.0
  %431 = vmatpush1.xpose.msra.mxu0 0.0
  %432 = vmatprep.subr.mxu0 0.0
  %433 = vmatpush1.xpose.msra.mxu0 0.0
  %434 = vmatprep.subr.mxu0 0.0
  %435 = vmatpush1.xpose.msra.mxu0 0.0
  %436 = vmatprep.subr.mxu0 0.0
  %437 = vmatpush1.xpose.msra.mxu0 0.0
  %438 = vmatprep.subr.mxu0 0.0
  %439 = vmatpush1.xpose.msra.mxu0 0.0
  %440 = vmatprep.subr.mxu0 0.0
  %441 = vmatpush1.xpose.msra.mxu0 0.0
  %442 = vmatprep.subr.mxu0 0.0
  %443 = vmatpush1.xpose.msra.mxu0 %v412
  %444 = vmatprep.subr.mxu0 0.0
  %445 = vmatpush1.xpose.msra.mxu0 %v409
  %446 = vmatprep.subr.mxu0 0.0
  %447 = vmatpush2.xpose.msra.mxu0 0.0
  %448 = vmatprep.subr.mxu0 0.0
  %449 = vmatpush2.xpose.msra.mxu0 0.0
  %450 = vmatprep.subr.mxu0 0.0
  %451 = vmatpush2.xpose.msra.mxu0 0.0
  %452 = vmatprep.subr.mxu0 0.0
  %453 = vmatpush2.xpose.msra.mxu0 0.0
  %454 = vmatprep.subr.mxu0 0.0
  %455 = vmatpush2.xpose.msra.mxu0 0.0
  %456 = vmatprep.subr.mxu0 0.0
  %457 = vmatpush2.xpose.msra.mxu0 0.0
  %458 = vmatprep.subr.mxu0 0.0
  %459 = vmatpush2.xpose.msra.mxu0 0.0
  %460 = vmatprep.subr.mxu0 0.0
  %461 = vmatpush2.xpose.msra.mxu0 0.0
  %462 = vmatprep.subr.mxu0 0.0
  %463 = vmatpush2.xpose.msra.mxu0 0.0
  %464 = vmatprep.subr.mxu0 0.0
  %465 = vmatpush2.xpose.msra.mxu0 0.0
  %466 = vmatprep.subr.mxu0 0.0
  %467 = vmatpush2.xpose.msra.mxu0 0.0
  %468 = vmatprep.subr.mxu0 0.0
  %469 = vmatpush2.xpose.msra.mxu0 0.0
  %470 = vmatprep.subr.mxu0 0.0
  %471 = vmatpush2.xpose.msra.mxu0 0.0
  %472 = vmatprep.subr.mxu0 0.0
  %473 = vmatpush2.xpose.msra.mxu0 0.0
  %474 = vmatprep.subr.mxu0 0.0
  %475 = vmatpush2.xpose.msra.mxu0 0.0
  %476 = vmatprep.subr.mxu0 0.0
  %477 = vmatpush2.xpose.msra.mxu0 0.0
  %478 = vmatprep.mubr.f32.mxu0 0.0
  %479 = vmatmul.mubr.f32.gmra.mxu0 %v403
  %v480 = vpop.f32.mrf.mxu0
  %v481 = vadd.f32 0.0, %v480
  %v482 = vpop.f32.mrf.mxu0
  %483 = vmatprep.mubr.f32.mxu0 0.0
  %484 = vmatmul.mubr.f32.gmra.mxu0 %v406
  %v485 = vpop.f32.mrf.mxu0
  %v486 = vadd.f32 0.0, %v485
  %v487 = vpop.f32.mrf.mxu0
  %488 = vdwg.mxu0
  %490 = vset.pattern.permute.xlu0 0
  %491 = vperm.xlu0 %490, %v45
  %v492 = vpop.permute.xlu0 %491
  %495 = vset.pattern.permute.xlu0 0
  %496 = vperm.xlu0 %495, %v46
  %v497 = vpop.permute.xlu0 %496
  %500 = vset.pattern.permute.xlu0 0
  %501 = vperm.xlu0 %500, %v47
  %v502 = vpop.permute.xlu0 %501
  %505 = vset.pattern.permute.xlu0 0
  %506 = vperm.xlu0 %505, %v48
  %v507 = vpop.permute.xlu0 %506
  %v510 = vsel %vm298, %v35, 0
  %v513 = vsel %vm298, %v36, 0
  %v516 = vsel %vm298, %v37, 0
  %v519 = vsel %vm298, %v38, 0
  %v522 = vsel %vm298, %v481, 0
  %v525 = vsel %vm298, %v486, 0
  %527 = vmatprep.subr.mxu0 0.0
  %528 = vmatpush1.xpose.msra.mxu0 0.0
  %529 = vmatprep.subr.mxu0 0.0
  %530 = vmatpush1.xpose.msra.mxu0 0.0
  %531 = vmatprep.subr.mxu0 0.0
  %532 = vmatpush1.xpose.msra.mxu0 0.0
  %533 = vmatprep.subr.mxu0 0.0
  %534 = vmatpush1.xpose.msra.mxu0 0.0
  %535 = vmatprep.subr.mxu0 0.0
  %536 = vmatpush1.xpose.msra.mxu0 0.0
  %537 = vmatprep.subr.mxu0 0.0
  %538 = vmatpush1.xpose.msra.mxu0 0.0
  %539 = vmatprep.subr.mxu0 0.0
  %540 = vmatpush1.xpose.msra.mxu0 0.0
  %541 = vmatprep.subr.mxu0 0.0
  %542 = vmatpush1.xpose.msra.mxu0 0.0
  %543 = vmatprep.subr.mxu0 0.0
  %544 = vmatpush1.xpose.msra.mxu0 0.0
  %545 = vmatprep.subr.mxu0 0.0
  %546 = vmatpush1.xpose.msra.mxu0 0.0
  %547 = vmatprep.subr.mxu0 0.0
  %548 = vmatpush1.xpose.msra.mxu0 0.0
  %549 = vmatprep.subr.mxu0 0.0
  %550 = vmatpush1.xpose.msra.mxu0 0.0
  %551 = vmatprep.subr.mxu0 0.0
  %552 = vmatpush1.xpose.msra.mxu0 0.0
  %553 = vmatprep.subr.mxu0 0.0
  %554 = vmatpush1.xpose.msra.mxu0 0.0
  %555 = vmatprep.subr.mxu0 0.0
  %556 = vmatpush1.xpose.msra.mxu0 %v525
  %557 = vmatprep.subr.mxu0 0.0
  %558 = vmatpush1.xpose.msra.mxu0 %v522
  %559 = vmatprep.subr.mxu0 0.0
  %560 = vmatpush2.xpose.msra.mxu0 0.0
  %561 = vmatprep.subr.mxu0 0.0
  %562 = vmatpush2.xpose.msra.mxu0 0.0
  %563 = vmatprep.subr.mxu0 0.0
  %564 = vmatpush2.xpose.msra.mxu0 0.0
  %565 = vmatprep.subr.mxu0 0.0
  %566 = vmatpush2.xpose.msra.mxu0 0.0
  %567 = vmatprep.subr.mxu0 0.0
  %568 = vmatpush2.xpose.msra.mxu0 0.0
  %569 = vmatprep.subr.mxu0 0.0
  %570 = vmatpush2.xpose.msra.mxu0 0.0
  %571 = vmatprep.subr.mxu0 0.0
  %572 = vmatpush2.xpose.msra.mxu0 0.0
  %573 = vmatprep.subr.mxu0 0.0
  %574 = vmatpush2.xpose.msra.mxu0 0.0
  %575 = vmatprep.subr.mxu0 0.0
  %576 = vmatpush2.xpose.msra.mxu0 0.0
  %577 = vmatprep.subr.mxu0 0.0
  %578 = vmatpush2.xpose.msra.mxu0 0.0
  %579 = vmatprep.subr.mxu0 0.0
  %580 = vmatpush2.xpose.msra.mxu0 0.0
  %581 = vmatprep.subr.mxu0 0.0
  %582 = vmatpush2.xpose.msra.mxu0 0.0
  %583 = vmatprep.subr.mxu0 0.0
  %584 = vmatpush2.xpose.msra.mxu0 0.0
  %585 = vmatprep.subr.mxu0 0.0
  %586 = vmatpush2.xpose.msra.mxu0 0.0
  %587 = vmatprep.subr.mxu0 0.0
  %588 = vmatpush2.xpose.msra.mxu0 0.0
  %589 = vmatprep.subr.mxu0 0.0
  %590 = vmatpush2.xpose.msra.mxu0 0.0
  %591 = vmatprep.mubr.f32.mxu0 0.0
  %592 = vmatmul.mubr.f32.gmra.mxu0 %v510
  %v593 = vpop.f32.mrf.mxu0
  %v594 = vadd.f32 %v492, %v593
  %v595 = vpop.f32.mrf.mxu0
  %596 = vmatprep.mubr.f32.mxu0 0.0
  %597 = vmatmul.mubr.f32.gmra.mxu0 %v513
  %v598 = vpop.f32.mrf.mxu0
  %v599 = vadd.f32 %v497, %v598
  %v600 = vpop.f32.mrf.mxu0
  %601 = vmatprep.mubr.f32.mxu0 0.0
  %602 = vmatmul.mubr.f32.gmra.mxu0 %v516
  %v603 = vpop.f32.mrf.mxu0
  %v604 = vadd.f32 %v502, %v603
  %v605 = vpop.f32.mrf.mxu0
  %606 = vmatprep.mubr.f32.mxu0 0.0
  %607 = vmatmul.mubr.f32.gmra.mxu0 %v519
  %v608 = vpop.f32.mrf.mxu0
  %v609 = vadd.f32 %v507, %v608
  %v610 = vpop.f32.mrf.mxu0
  %611 = vdwg.mxu0
  %v612 = vadd.f32 %v594, %v49
  %v613 = vadd.f32 %v599, %v50
  %v614 = vadd.f32 %v604, %v51
  %v615 = vadd.f32 %v609, %v52
  %616 = vst.msk [vmem:[%s8] sm:$0xff] %vm298, %v612
  %617 = vst.msk [vmem:[%s8 + $0x8] sm:$0xff] %vm298, %v613
  %618 = vst.msk [vmem:[%s8 + $0x10] sm:$0xff] %vm298, %v614
  %619 = vst.msk [vmem:[%s8 + $0x18] sm:$0xff] %vm298, %v615
  %s620 = scalar_lea.vmem %s0, 32
  %v621 = vld [vmem:[%s620] sm:$0xff]
  %v622 = vld [vmem:[%s620 + $0x8] sm:$0xff]
  %v623 = vld [vmem:[%s620 + $0x10] sm:$0xff]
  %v624 = vld [vmem:[%s620 + $0x18] sm:$0xff]
  %s625 = scalar_lea.vmem %s1, 32
  %v626 = vld [vmem:[%s625] sm:$0xff]
  %v627 = vld [vmem:[%s625 + $0x8] sm:$0xff]
  %v628 = vld [vmem:[%s625 + $0x10] sm:$0xff]
  %v629 = vld [vmem:[%s625 + $0x18] sm:$0xff]
  %630 = vmatprep.subr.mxu0 0.0
  %631 = vmatpush1.msra.mxu0 0.0
  %632 = vmatprep.subr.mxu0 0.0
  %633 = vmatpush1.msra.mxu0 0.0
  %634 = vmatprep.subr.mxu0 0.0
  %635 = vmatpush1.msra.mxu0 0.0
  %636 = vmatprep.subr.mxu0 0.0
  %637 = vmatpush1.msra.mxu0 0.0
  %638 = vmatprep.subr.mxu0 0.0
  %639 = vmatpush1.msra.mxu0 0.0
  %640 = vmatprep.subr.mxu0 0.0
  %641 = vmatpush1.msra.mxu0 0.0
  %642 = vmatprep.subr.mxu0 0.0
  %643 = vmatpush1.msra.mxu0 0.0
  %644 = vmatprep.subr.mxu0 0.0
  %645 = vmatpush1.msra.mxu0 0.0
  %646 = vmatprep.subr.mxu0 0.0
  %647 = vmatpush1.msra.mxu0 0.0
  %648 = vmatprep.subr.mxu0 0.0
  %649 = vmatpush1.msra.mxu0 0.0
  %650 = vmatprep.subr.mxu0 0.0
  %651 = vmatpush1.msra.mxu0 0.0
  %652 = vmatprep.subr.mxu0 0.0
  %653 = vmatpush1.msra.mxu0 0.0
  %654 = vmatprep.subr.mxu0 0.0
  %655 = vmatpush1.msra.mxu0 %v624
  %656 = vmatprep.subr.mxu0 0.0
  %657 = vmatpush1.msra.mxu0 %v623
  %658 = vmatprep.subr.mxu0 0.0
  %659 = vmatpush1.msra.mxu0 %v622
  %660 = vmatprep.subr.mxu0 0.0
  %661 = vmatpush1.msra.mxu0 %v621
  %662 = vmatprep.subr.mxu0 0.0
  %663 = vmatpush2.msra.mxu0 0.0
  %664 = vmatprep.subr.mxu0 0.0
  %665 = vmatpush2.msra.mxu0 0.0
  %666 = vmatprep.subr.mxu0 0.0
  %667 = vmatpush2.msra.mxu0 0.0
  %668 = vmatprep.subr.mxu0 0.0
  %669 = vmatpush2.msra.mxu0 0.0
  %670 = vmatprep.subr.mxu0 0.0
  %671 = vmatpush2.msra.mxu0 0.0
  %672 = vmatprep.subr.mxu0 0.0
  %673 = vmatpush2.msra.mxu0 0.0
  %674 = vmatprep.subr.mxu0 0.0
  %675 = vmatpush2.msra.mxu0 0.0
  %676 = vmatprep.subr.mxu0 0.0
  %677 = vmatpush2.msra.mxu0 0.0
  %678 = vmatprep.subr.mxu0 0.0
  %679 = vmatpush2.msra.mxu0 0.0
  %680 = vmatprep.subr.mxu0 0.0
  %681 = vmatpush2.msra.mxu0 0.0
  %682 = vmatprep.subr.mxu0 0.0
  %683 = vmatpush2.msra.mxu0 0.0
  %684 = vmatprep.subr.mxu0 0.0
  %685 = vmatpush2.msra.mxu0 0.0
  %686 = vmatprep.subr.mxu0 0.0
  %687 = vmatpush2.msra.mxu0 0.0
  %688 = vmatprep.subr.mxu0 0.0
  %689 = vmatpush2.msra.mxu0 0.0
  %690 = vmatprep.subr.mxu0 0.0
  %691 = vmatpush2.msra.mxu0 0.0
  %692 = vmatprep.subr.mxu0 0.0
  %693 = vmatpush2.msra.mxu0 0.0
  %694 = vmatprep.mubr.f32.mxu0 0.0
  %695 = vmatmul.mubr.f32.gmra.mxu0 %v69
  %v696 = vpop.f32.mrf.mxu0
  %v697 = vadd.f32 %v60, %v696
  %v698 = vpop.f32.mrf.mxu0
  %699 = vmatprep.mubr.f32.mxu0 0.0
  %700 = vmatmul.mubr.f32.gmra.mxu0 %v72
  %v701 = vpop.f32.mrf.mxu0
  %v702 = vadd.f32 %v65, %v701
  %v703 = vpop.f32.mrf.mxu0
  %704 = vdwg.mxu0
  %705 = vmatprep.subr.mxu0 0.0
  %706 = vmatpush1.msra.mxu0 0.0
  %707 = vmatprep.subr.mxu0 0.0
  %708 = vmatpush1.msra.mxu0 0.0
  %709 = vmatprep.subr.mxu0 0.0
  %710 = vmatpush1.msra.mxu0 0.0
  %711 = vmatprep.subr.mxu0 0.0
  %712 = vmatpush1.msra.mxu0 0.0
  %713 = vmatprep.subr.mxu0 0.0
  %714 = vmatpush1.msra.mxu0 0.0
  %715 = vmatprep.subr.mxu0 0.0
  %716 = vmatpush1.msra.mxu0 0.0
  %717 = vmatprep.subr.mxu0 0.0
  %718 = vmatpush1.msra.mxu0 0.0
  %719 = vmatprep.subr.mxu0 0.0
  %720 = vmatpush1.msra.mxu0 0.0
  %721 = vmatprep.subr.mxu0 0.0
  %722 = vmatpush1.msra.mxu0 0.0
  %723 = vmatprep.subr.mxu0 0.0
  %724 = vmatpush1.msra.mxu0 0.0
  %725 = vmatprep.subr.mxu0 0.0
  %726 = vmatpush1.msra.mxu0 0.0
  %727 = vmatprep.subr.mxu0 0.0
  %728 = vmatpush1.msra.mxu0 0.0
  %729 = vmatprep.subr.mxu0 0.0
  %730 = vmatpush1.msra.mxu0 %v629
  %731 = vmatprep.subr.mxu0 0.0
  %732 = vmatpush1.msra.mxu0 %v628
  %733 = vmatprep.subr.mxu0 0.0
  %734 = vmatpush1.msra.mxu0 %v627
  %735 = vmatprep.subr.mxu0 0.0
  %736 = vmatpush1.msra.mxu0 %v626
  %737 = vmatprep.subr.mxu0 0.0
  %738 = vmatpush2.msra.mxu0 0.0
  %739 = vmatprep.subr.mxu0 0.0
  %740 = vmatpush2.msra.mxu0 0.0
  %741 = vmatprep.subr.mxu0 0.0
  %742 = vmatpush2.msra.mxu0 0.0
  %743 = vmatprep.subr.mxu0 0.0
  %744 = vmatpush2.msra.mxu0 0.0
  %745 = vmatprep.subr.mxu0 0.0
  %746 = vmatpush2.msra.mxu0 0.0
  %747 = vmatprep.subr.mxu0 0.0
  %748 = vmatpush2.msra.mxu0 0.0
  %749 = vmatprep.subr.mxu0 0.0
  %750 = vmatpush2.msra.mxu0 0.0
  %751 = vmatprep.subr.mxu0 0.0
  %752 = vmatpush2.msra.mxu0 0.0
  %753 = vmatprep.subr.mxu0 0.0
  %754 = vmatpush2.msra.mxu0 0.0
  %755 = vmatprep.subr.mxu0 0.0
  %756 = vmatpush2.msra.mxu0 0.0
  %757 = vmatprep.subr.mxu0 0.0
  %758 = vmatpush2.msra.mxu0 0.0
  %759 = vmatprep.subr.mxu0 0.0
  %760 = vmatpush2.msra.mxu0 0.0
  %761 = vmatprep.subr.mxu0 0.0
  %762 = vmatpush2.msra.mxu0 0.0
  %763 = vmatprep.subr.mxu0 0.0
  %764 = vmatpush2.msra.mxu0 0.0
  %765 = vmatprep.subr.mxu0 0.0
  %766 = vmatpush2.msra.mxu0 0.0
  %767 = vmatprep.subr.mxu0 0.0
  %768 = vmatpush2.msra.mxu0 0.0
  %769 = vmatprep.mubr.f32.mxu0 0.0
  %770 = vmatmul.mubr.f32.gmra.mxu0 %v170
  %v771 = vpop.f32.mrf.mxu0
  %v772 = vadd.f32 %v152, %v771
  %v773 = vpop.f32.mrf.mxu0
  %774 = vmatprep.mubr.f32.mxu0 0.0
  %775 = vmatmul.mubr.f32.gmra.mxu0 %v173
  %v776 = vpop.f32.mrf.mxu0
  %v777 = vadd.f32 %v157, %v776
  %v778 = vpop.f32.mrf.mxu0
  %779 = vmatprep.mubr.f32.mxu0 0.0
  %780 = vmatmul.mubr.f32.gmra.mxu0 %v176
  %v781 = vpop.f32.mrf.mxu0
  %v782 = vadd.f32 %v162, %v781
  %v783 = vpop.f32.mrf.mxu0
  %784 = vmatprep.mubr.f32.mxu0 0.0
  %785 = vmatmul.mubr.f32.gmra.mxu0 %v179
  %v786 = vpop.f32.mrf.mxu0
  %v787 = vadd.f32 %v167, %v786
  %v788 = vpop.f32.mrf.mxu0
  %789 = vdwg.mxu0
  %790 = vxpose.xlu0.b32.start [1/16] %v697, 128
  %791 = vxpose.xlu0.b32.cont [2/16] %v702, 128
  %792 = vxpose.xlu0.b32.cont [3/16] 0.0, 128
  %793 = vxpose.xlu0.b32.cont [4/16] 0.0, 128
  %794 = vxpose.xlu0.b32.cont [5/16] 0.0, 128
  %795 = vxpose.xlu0.b32.cont [6/16] 0.0, 128
  %796 = vxpose.xlu0.b32.cont [7/16] 0.0, 128
  %797 = vxpose.xlu0.b32.cont [8/16] 0.0, 128
  %798 = vxpose.xlu0.b32.cont [9/16] 0.0, 128
  %799 = vxpose.xlu0.b32.cont [10/16] 0.0, 128
  %800 = vxpose.xlu0.b32.cont [11/16] 0.0, 128
  %801 = vxpose.xlu0.b32.cont [12/16] 0.0, 128
  %802 = vxpose.xlu0.b32.cont [13/16] 0.0, 128
  %803 = vxpose.xlu0.b32.cont [14/16] 0.0, 128
  %804 = vxpose.xlu0.b32.cont [15/16] 0.0, 128
  %805 = vxpose.xlu0.b32.end [16/16] 0.0, 128
  %v806 = vpop.trf.xlu0
  %v807 = vpop.trf.xlu0
  %v808 = vpop.trf.xlu0
  %v809 = vpop.trf.xlu0
  %v810 = vpop.trf.xlu0
  %v811 = vpop.trf.xlu0
  %v812 = vpop.trf.xlu0
  %v813 = vpop.trf.xlu0
  %v814 = vpop.trf.xlu0
  %v815 = vpop.trf.xlu0
  %v816 = vpop.trf.xlu0
  %v817 = vpop.trf.xlu0
  %v818 = vpop.trf.xlu0
  %v819 = vpop.trf.xlu0
  %v820 = vpop.trf.xlu0
  %v821 = vpop.trf.xlu0
  %v823 = vsel %vm298, %v806, 0
  %v826 = vsel %vm298, %v807, 0
  %828 = vmatprep.subr.mxu0 0.0
  %829 = vmatpush1.msra.mxu0 0.0
  %830 = vmatprep.subr.mxu0 0.0
  %831 = vmatpush1.msra.mxu0 0.0
  %832 = vmatprep.subr.mxu0 0.0
  %833 = vmatpush1.msra.mxu0 0.0
  %834 = vmatprep.subr.mxu0 0.0
  %835 = vmatpush1.msra.mxu0 0.0
  %836 = vmatprep.subr.mxu0 0.0
  %837 = vmatpush1.msra.mxu0 0.0
  %838 = vmatprep.subr.mxu0 0.0
  %839 = vmatpush1.msra.mxu0 0.0
  %840 = vmatprep.subr.mxu0 0.0
  %841 = vmatpush1.msra.mxu0 0.0
  %842 = vmatprep.subr.mxu0 0.0
  %843 = vmatpush1.msra.mxu0 0.0
  %844 = vmatprep.subr.mxu0 0.0
  %845 = vmatpush1.msra.mxu0 0.0
  %846 = vmatprep.subr.mxu0 0.0
  %847 = vmatpush1.msra.mxu0 0.0
  %848 = vmatprep.subr.mxu0 0.0
  %849 = vmatpush1.msra.mxu0 0.0
  %850 = vmatprep.subr.mxu0 0.0
  %851 = vmatpush1.msra.mxu0 0.0
  %852 = vmatprep.subr.mxu0 0.0
  %853 = vmatpush1.msra.mxu0 0.0
  %854 = vmatprep.subr.mxu0 0.0
  %855 = vmatpush1.msra.mxu0 0.0
  %856 = vmatprep.subr.mxu0 0.0
  %857 = vmatpush1.msra.mxu0 %v787
  %858 = vmatprep.subr.mxu0 0.0
  %859 = vmatpush1.msra.mxu0 %v782
  %860 = vmatprep.subr.mxu0 0.0
  %861 = vmatpush2.msra.mxu0 0.0
  %862 = vmatprep.subr.mxu0 0.0
  %863 = vmatpush2.msra.mxu0 0.0
  %864 = vmatprep.subr.mxu0 0.0
  %865 = vmatpush2.msra.mxu0 0.0
  %866 = vmatprep.subr.mxu0 0.0
  %867 = vmatpush2.msra.mxu0 0.0
  %868 = vmatprep.subr.mxu0 0.0
  %869 = vmatpush2.msra.mxu0 0.0
  %870 = vmatprep.subr.mxu0 0.0
  %871 = vmatpush2.msra.mxu0 0.0
  %872 = vmatprep.subr.mxu0 0.0
  %873 = vmatpush2.msra.mxu0 0.0
  %874 = vmatprep.subr.mxu0 0.0
  %875 = vmatpush2.msra.mxu0 0.0
  %876 = vmatprep.subr.mxu0 0.0
  %877 = vmatpush2.msra.mxu0 0.0
  %878 = vmatprep.subr.mxu0 0.0
  %879 = vmatpush2.msra.mxu0 0.0
  %880 = vmatprep.subr.mxu0 0.0
  %881 = vmatpush2.msra.mxu0 0.0
  %882 = vmatprep.subr.mxu0 0.0
  %883 = vmatpush2.msra.mxu0 0.0
  %884 = vmatprep.subr.mxu0 0.0
  %885 = vmatpush2.msra.mxu0 0.0
  %886 = vmatprep.subr.mxu0 0.0
  %887 = vmatpush2.msra.mxu0 0.0
  %888 = vmatprep.subr.mxu0 0.0
  %889 = vmatpush2.msra.mxu0 0.0
  %890 = vmatprep.subr.mxu0 0.0
  %891 = vmatpush2.msra.mxu0 0.0
  %892 = vmatprep.mubr.f32.mxu0 0.0
  %893 = vmatmul.mubr.f32.gmra.mxu0 %v823
  %v894 = vpop.f32.mrf.mxu0
  %v895 = vadd.f32 0.0, %v894
  %v896 = vpop.f32.mrf.mxu0
  %897 = vmatprep.mubr.f32.mxu0 0.0
  %898 = vmatmul.mubr.f32.gmra.mxu0 %v826
  %v899 = vpop.f32.mrf.mxu0
  %v900 = vadd.f32 0.0, %v899
  %v901 = vpop.f32.mrf.mxu0
  %902 = vdwg.mxu0
  %v903 = vsel %vm298, %v895, -inf
  %904 = vmax.xlane.f32.xlu0 %v903
  %v905 = vpop.xlane.xlu0 %904
  %v906 = vsel %vm298, %v900, -inf
  %907 = vmax.xlane.f32.xlu0 %v906
  %v908 = vpop.xlane.xlu0 %907
  %v909 = vsub.f32 %v895, %v905
  %v910 = vsub.f32 %v900, %v908
  %v911 = vmul.f32 %v909, 1.442695
  %v912 = vpow.pop %v911
  %v913 = vmul.f32 %v910, 1.442695
  %v914 = vpow.pop %v913
  %v915 = vsel %vm298, %v912, 0.0
  %916 = vadd.xlane.f32.xlu0 %v915
  %v917 = vpop.xlane.xlu0 %916
  %v918 = vsel %vm298, %v914, 0.0
  %919 = vadd.xlane.f32.xlu0 %v918
  %v920 = vpop.xlane.xlu0 %919
  %v921 = vrcp.pop %v917
  %v922 = vrcp.pop %v920
  %v923 = vmul.f32 %v912, %v921
  %v924 = vmul.f32 %v914, %v922
  %v926 = vsel %vm298, %v923, 0
  %v929 = vsel %vm298, %v924, 0
  %v932 = vsel %vm298, %v772, 0
  %v935 = vsel %vm298, %v777, 0
  %937 = vmatprep.subr.mxu0 0.0
  %938 = vmatpush1.xpose.msra.mxu0 0.0
  %939 = vmatprep.subr.mxu0 0.0
  %940 = vmatpush1.xpose.msra.mxu0 0.0
  %941 = vmatprep.subr.mxu0 0.0
  %942 = vmatpush1.xpose.msra.mxu0 0.0
  %943 = vmatprep.subr.mxu0 0.0
  %944 = vmatpush1.xpose.msra.mxu0 0.0
  %945 = vmatprep.subr.mxu0 0.0
  %946 = vmatpush1.xpose.msra.mxu0 0.0
  %947 = vmatprep.subr.mxu0 0.0
  %948 = vmatpush1.xpose.msra.mxu0 0.0
  %949 = vmatprep.subr.mxu0 0.0
  %950 = vmatpush1.xpose.msra.mxu0 0.0
  %951 = vmatprep.subr.mxu0 0.0
  %952 = vmatpush1.xpose.msra.mxu0 0.0
  %953 = vmatprep.subr.mxu0 0.0
  %954 = vmatpush1.xpose.msra.mxu0 0.0
  %955 = vmatprep.subr.mxu0 0.0
  %956 = vmatpush1.xpose.msra.mxu0 0.0
  %957 = vmatprep.subr.mxu0 0.0
  %958 = vmatpush1.xpose.msra.mxu0 0.0
  %959 = vmatprep.subr.mxu0 0.0
  %960 = vmatpush1.xpose.msra.mxu0 0.0
  %961 = vmatprep.subr.mxu0 0.0
  %962 = vmatpush1.xpose.msra.mxu0 0.0
  %963 = vmatprep.subr.mxu0 0.0
  %964 = vmatpush1.xpose.msra.mxu0 0.0
  %965 = vmatprep.subr.mxu0 0.0
  %966 = vmatpush1.xpose.msra.mxu0 %v935
  %967 = vmatprep.subr.mxu0 0.0
  %968 = vmatpush1.xpose.msra.mxu0 %v932
  %969 = vmatprep.subr.mxu0 0.0
  %970 = vmatpush2.xpose.msra.mxu0 0.0
  %971 = vmatprep.subr.mxu0 0.0
  %972 = vmatpush2.xpose.msra.mxu0 0.0
  %973 = vmatprep.subr.mxu0 0.0
  %974 = vmatpush2.xpose.msra.mxu0 0.0
  %975 = vmatprep.subr.mxu0 0.0
  %976 = vmatpush2.xpose.msra.mxu0 0.0
  %977 = vmatprep.subr.mxu0 0.0
  %978 = vmatpush2.xpose.msra.mxu0 0.0
  %979 = vmatprep.subr.mxu0 0.0
  %980 = vmatpush2.xpose.msra.mxu0 0.0
  %981 = vmatprep.subr.mxu0 0.0
  %982 = vmatpush2.xpose.msra.mxu0 0.0
  %983 = vmatprep.subr.mxu0 0.0
  %984 = vmatpush2.xpose.msra.mxu0 0.0
  %985 = vmatprep.subr.mxu0 0.0
  %986 = vmatpush2.xpose.msra.mxu0 0.0
  %987 = vmatprep.subr.mxu0 0.0
  %988 = vmatpush2.xpose.msra.mxu0 0.0
  %989 = vmatprep.subr.mxu0 0.0
  %990 = vmatpush2.xpose.msra.mxu0 0.0
  %991 = vmatprep.subr.mxu0 0.0
  %992 = vmatpush2.xpose.msra.mxu0 0.0
  %993 = vmatprep.subr.mxu0 0.0
  %994 = vmatpush2.xpose.msra.mxu0 0.0
  %995 = vmatprep.subr.mxu0 0.0
  %996 = vmatpush2.xpose.msra.mxu0 0.0
  %997 = vmatprep.subr.mxu0 0.0
  %998 = vmatpush2.xpose.msra.mxu0 0.0
  %999 = vmatprep.subr.mxu0 0.0
  %1000 = vmatpush2.xpose.msra.mxu0 0.0
  %1001 = vmatprep.mubr.f32.mxu0 0.0
  %1002 = vmatmul.mubr.f32.gmra.mxu0 %v926
  %v1003 = vpop.f32.mrf.mxu0
  %v1004 = vadd.f32 0.0, %v1003
  %v1005 = vpop.f32.mrf.mxu0
  %1006 = vmatprep.mubr.f32.mxu0 0.0
  %1007 = vmatmul.mubr.f32.gmra.mxu0 %v929
  %v1008 = vpop.f32.mrf.mxu0
  %v1009 = vadd.f32 0.0, %v1008
  %v1010 = vpop.f32.mrf.mxu0
  %1011 = vdwg.mxu0
  %v1013 = vsel %vm298, %v1004, 0
  %v1016 = vsel %vm298, %v1009, 0
  %1018 = vmatprep.subr.mxu0 0.0
  %1019 = vmatpush1.xpose.msra.mxu0 0.0
  %1020 = vmatprep.subr.mxu0 0.0
  %1021 = vmatpush1.xpose.msra.mxu0 0.0
  %1022 = vmatprep.subr.mxu0 0.0
  %1023 = vmatpush1.xpose.msra.mxu0 0.0
  %1024 = vmatprep.subr.mxu0 0.0
  %1025 = vmatpush1.xpose.msra.mxu0 0.0
  %1026 = vmatprep.subr.mxu0 0.0
  %1027 = vmatpush1.xpose.msra.mxu0 0.0
  %1028 = vmatprep.subr.mxu0 0.0
  %1029 = vmatpush1.xpose.msra.mxu0 0.0
  %1030 = vmatprep.subr.mxu0 0.0
  %1031 = vmatpush1.xpose.msra.mxu0 0.0
  %1032 = vmatprep.subr.mxu0 0.0
  %1033 = vmatpush1.xpose.msra.mxu0 0.0
  %1034 = vmatprep.subr.mxu0 0.0
  %1035 = vmatpush1.xpose.msra.mxu0 0.0
  %1036 = vmatprep.subr.mxu0 0.0
  %1037 = vmatpush1.xpose.msra.mxu0 0.0
  %1038 = vmatprep.subr.mxu0 0.0
  %1039 = vmatpush1.xpose.msra.mxu0 0.0
  %1040 = vmatprep.subr.mxu0 0.0
  %1041 = vmatpush1.xpose.msra.mxu0 0.0
  %1042 = vmatprep.subr.mxu0 0.0
  %1043 = vmatpush1.xpose.msra.mxu0 0.0
  %1044 = vmatprep.subr.mxu0 0.0
  %1045 = vmatpush1.xpose.msra.mxu0 0.0
  %1046 = vmatprep.subr.mxu0 0.0
  %1047 = vmatpush1.xpose.msra.mxu0 %v1016
  %1048 = vmatprep.subr.mxu0 0.0
  %1049 = vmatpush1.xpose.msra.mxu0 %v1013
  %1050 = vmatprep.subr.mxu0 0.0
  %1051 = vmatpush2.xpose.msra.mxu0 0.0
  %1052 = vmatprep.subr.mxu0 0.0
  %1053 = vmatpush2.xpose.msra.mxu0 0.0
  %1054 = vmatprep.subr.mxu0 0.0
  %1055 = vmatpush2.xpose.msra.mxu0 0.0
  %1056 = vmatprep.subr.mxu0 0.0
  %1057 = vmatpush2.xpose.msra.mxu0 0.0
  %1058 = vmatprep.subr.mxu0 0.0
  %1059 = vmatpush2.xpose.msra.mxu0 0.0
  %1060 = vmatprep.subr.mxu0 0.0
  %1061 = vmatpush2.xpose.msra.mxu0 0.0
  %1062 = vmatprep.subr.mxu0 0.0
  %1063 = vmatpush2.xpose.msra.mxu0 0.0
  %1064 = vmatprep.subr.mxu0 0.0
  %1065 = vmatpush2.xpose.msra.mxu0 0.0
  %1066 = vmatprep.subr.mxu0 0.0
  %1067 = vmatpush2.xpose.msra.mxu0 0.0
  %1068 = vmatprep.subr.mxu0 0.0
  %1069 = vmatpush2.xpose.msra.mxu0 0.0
  %1070 = vmatprep.subr.mxu0 0.0
  %1071 = vmatpush2.xpose.msra.mxu0 0.0
  %1072 = vmatprep.subr.mxu0 0.0
  %1073 = vmatpush2.xpose.msra.mxu0 0.0
  %1074 = vmatprep.subr.mxu0 0.0
  %1075 = vmatpush2.xpose.msra.mxu0 0.0
  %1076 = vmatprep.subr.mxu0 0.0
  %1077 = vmatpush2.xpose.msra.mxu0 0.0
  %1078 = vmatprep.subr.mxu0 0.0
  %1079 = vmatpush2.xpose.msra.mxu0 0.0
  %1080 = vmatprep.subr.mxu0 0.0
  %1081 = vmatpush2.xpose.msra.mxu0 0.0
  %1082 = vmatprep.mubr.f32.mxu0 0.0
  %1083 = vmatmul.mubr.f32.gmra.mxu0 %v510
  %v1084 = vpop.f32.mrf.mxu0
  %v1085 = vadd.f32 %v492, %v1084
  %v1086 = vpop.f32.mrf.mxu0
  %1087 = vmatprep.mubr.f32.mxu0 0.0
  %1088 = vmatmul.mubr.f32.gmra.mxu0 %v513
  %v1089 = vpop.f32.mrf.mxu0
  %v1090 = vadd.f32 %v497, %v1089
  %v1091 = vpop.f32.mrf.mxu0
  %1092 = vmatprep.mubr.f32.mxu0 0.0
  %1093 = vmatmul.mubr.f32.gmra.mxu0 %v516
  %v1094 = vpop.f32.mrf.mxu0
  %v1095 = vadd.f32 %v502, %v1094
  %v1096 = vpop.f32.mrf.mxu0
  %1097 = vmatprep.mubr.f32.mxu0 0.0
  %1098 = vmatmul.mubr.f32.gmra.mxu0 %v519
  %v1099 = vpop.f32.mrf.mxu0
  %v1100 = vadd.f32 %v507, %v1099
  %v1101 = vpop.f32.mrf.mxu0
  %1102 = vdwg.mxu0
  %v1103 = vadd.f32 %v1085, %v621
  %v1104 = vadd.f32 %v1090, %v622
  %v1105 = vadd.f32 %v1095, %v623
  %v1106 = vadd.f32 %v1100, %v624
  %s1107 = scalar_lea.vmem %s8, 32
  %1108 = vst.msk [vmem:[%s1107] sm:$0xff] %vm298, %v1103
  %1109 = vst.msk [vmem:[%s1107 + $0x8] sm:$0xff] %vm298, %v1104
  %1110 = vst.msk [vmem:[%s1107 + $0x10] sm:$0xff] %vm298, %v1105
  %1111 = vst.msk [vmem:[%s1107 + $0x18] sm:$0xff] %vm298, %v1106
  // Predicated region
  $region34: #{tpu_custom_call.1} parent=0 // pred_check
    _
  $region35: #{tpu_custom_call.1} parent=0 // pred_check_branch
    %1113 = sbr.rel (0) target = $region37
  $region36: #{tpu_custom_call.1} parent=0 // pred_region
    _
  $region37: #{tpu_custom_call.1} parent=0 // pred_fallthru
    _
  // Predicated region
  $region38: #{tpu_custom_call.1} parent=0 // pred_check
    _
  $region39: #{tpu_custom_call.1} parent=0 // pred_check_branch
    %1115 = sbr.rel (0) target = $region41
  $region40: #{tpu_custom_call.1} parent=0 // pred_region
    _
  $region41: #{tpu_custom_call.1} parent=0 // pred_fallthru
    _

</llo_original>
